<compile_context>
chip_gen: v7x
topology: tpu7x:2x2x1
jax: 0.10.0
libtpu: 0.0.40
codegen_flags: <defaults>
</compile_context>

<pallas_src>
import functools

import jax
import jax.numpy as jnp
from jax.experimental import pallas as pl
from jax.experimental.pallas import tpu as pltpu

_SUBLANE = 8
_MIB = 1024 * 1024


def _round_up(x, m):
    return ((x + m - 1) // m) * m


def _vmem_budget_bytes():
    """Conservative per-generation VMEM budget (v7x has only 64 MiB per core)."""
    try:
        kind = jax.devices()[0].device_kind.lower()
    except Exception:  # pragma: no cover - no accelerator visible
        kind = ""
    if "v2" in kind or "v3" in kind:
        return 12 * _MIB
    if "v5" in kind or "v6" in kind:
        return 96 * _MIB          # 128 MiB physical on v5e / v6e
    return 48 * _MIB              # v7x (64 MiB physical) and unknown chips


def _choose_batch_tile(b, tb=None):
    """Batch tile: multiple of 8 sublanes, >= 2 grid blocks whenever possible
    (pipeline overlap + v7x's two TensorCores), capped well below VMEM."""
    if tb is None:
        cap = 4096 if _vmem_budget_bytes() > 64 * _MIB else 2048
        tb = min(cap, pl.cdiv(b, 2))
    tb = min(tb, b)
    if tb < b:
        tb = _round_up(tb, _SUBLANE)
    return b if tb >= b else tb


# ---------------------------------------------------------------------------
# Fused-gather kernel: ids + VMEM-resident tables -> scores.
# ---------------------------------------------------------------------------
def _fused_kernel(c_ref, cn_ref, vtab_ref, utab_ref, o_ref):
    """Fused embedding gather + skip-gram scores for one batch tile.

    c_ref    : (TB, M)   int32  center word ids
    cn_ref   : (TB, L)   int32  context + negative word ids
    vtab_ref : (V, D)    f32    center table (VMEM resident, fetched once)
    utab_ref : (V, D)    f32    context table (VMEM resident, fetched once)
    o_ref    : (TB, M*L) f32    o[b, m*L + l] = <vtab[c[b,m]], utab[cn[b,l]]>
    """
    v_dim = vtab_ref.shape[0]
    m_dim = c_ref.shape[1]
    l_dim = cn_ref.shape[1]
    vtab = vtab_ref[...]
    utab = utab_ref[...]

    cols = []
    # Static unroll: M*L is tiny for word2vec (M == 1, L = #ctx + #neg).
    # TODO(synk): chunk over L with lax.fori_loop(unroll=True) if L grows large.
    for m in range(m_dim):
        # Clip protects the gather against garbage ids in the (masked-off)
        # out-of-bounds rows of a partial last batch tile.
        c_idx = jnp.clip(c_ref[:, m], 0, v_dim - 1)
        v_m = jnp.take(vtab, c_idx, axis=0)                     # (TB, D)
        for l in range(l_dim):
            cn_idx = jnp.clip(cn_ref[:, l], 0, v_dim - 1)
            u_l = jnp.take(utab, cn_idx, axis=0)                # (TB, D)
            # VPU multiply + cross-lane reduce over D; the MXU is pointless for
            # per-example length-D dot products.
            cols.append(jnp.sum(v_m * u_l, axis=-1, keepdims=True))   # (TB, 1)
    # Single stacked store (TB, M*L) instead of M*L masked single-column stores.
    o_ref[...] = jnp.concatenate(cols, axis=-1).astype(o_ref.dtype)


def _fused_scores(v_weight, u_weight, centers, contexts_negatives, *,
                  tb=None, vmem_limit_bytes=None):
    """(B, M*L) scores with the embedding gather fused into the kernel."""
    b, m_dim = centers.shape
    l_dim = contexts_negatives.shape[1]
    v_dim, d = v_weight.shape

    v_tab = v_weight.astype(jnp.float32)      # f32 tables: one-time HBM read,
    u_tab = u_weight.astype(jnp.float32)      # canonical dtype for the gather
    centers = centers.astype(jnp.int32)
    contexts_negatives = contexts_negatives.astype(jnp.int32)

    tb_eff = _choose_batch_tile(b, tb)
    grid = (pl.cdiv(b, tb_eff),)              # partial last block is fine (no pad)
    if vmem_limit_bytes is None:
        vmem_limit_bytes = _vmem_budget_bytes()

    return pl.pallas_call(
        _fused_kernel,
        out_shape=jax.ShapeDtypeStruct((b, m_dim * l_dim), jnp.float32),
        grid_spec=pltpu.PrefetchScalarGridSpec(
            num_scalar_prefetch=0,
            grid=grid,
            in_specs=[
                pl.BlockSpec((tb_eff, m_dim), lambda i: (i, 0)),
                pl.BlockSpec((tb_eff, l_dim), lambda i: (i, 0)),
                # Constant block index => the tables are DMA'd from HBM once and
                # stay VMEM-resident across all grid steps.
                pl.BlockSpec((v_dim, d), lambda i: (0, 0)),
                pl.BlockSpec((v_dim, d), lambda i: (0, 0)),
            ],
            out_specs=pl.BlockSpec((tb_eff, m_dim * l_dim), lambda i: (i, 0)),
        ),
        compiler_params=pltpu.CompilerParams(
            dimension_semantics=("parallel",),
            vmem_limit_bytes=vmem_limit_bytes,
        ),
    )(centers, contexts_negatives, v_tab, u_tab)


@functools.lru_cache(maxsize=None)
def _fused_gather_supported():
    """Probe (once) whether this jaxlib's Mosaic lowering supports the in-kernel
    row gather, and that it is numerically correct."""
    try:
        v_w = jnp.linspace(-1.0, 1.0, 16 * 32, dtype=jnp.float32).reshape(16, 32)
        u_w = jnp.linspace(1.0, -1.0, 16 * 32, dtype=jnp.float32).reshape(16, 32)
        c = (jnp.arange(8, dtype=jnp.int32) % 16).reshape(8, 1)
        cn = ((jnp.arange(16, dtype=jnp.int32) * 3) % 16).reshape(8, 2)
        got = jax.block_until_ready(_fused_scores(v_w, u_w, c, cn, tb=8))
        want = jnp.einsum("bmd,bld->bml",
                          jnp.take(v_w, c, axis=0),
                          jnp.take(u_w, cn, axis=0)).reshape(8, 2)
        return bool(jnp.allclose(got, want, rtol=1e-4, atol=1e-4))
    except Exception:   # any lowering/compile failure -> use the fallback path
        return False


# ---------------------------------------------------------------------------
# Fallback kernel: pre-gathered (XLA gather) activations -> scores.
# ---------------------------------------------------------------------------
def _pregathered_kernel(v_ref, u_ref, o_ref):
    """v_ref: (TB, M, D), u_ref: (TB, L, D), o_ref: (TB, M*L)."""
    m_dim = v_ref.shape[1]
    l_dim = u_ref.shape[1]
    cols = []
    for m in range(m_dim):
        v_m = v_ref[:, m, :].astype(jnp.float32)                # (TB, D)
        for l in range(l_dim):
            u_l = u_ref[:, l, :].astype(jnp.float32)            # (TB, D)
            cols.append(jnp.sum(v_m * u_l, axis=-1, keepdims=True))
    o_ref[...] = jnp.concatenate(cols, axis=-1).astype(o_ref.dtype)


def _pregathered_scores(v_rows, u_rows, *, tb=None, vmem_limit_bytes=None):
    """(B, M*L) scores from pre-gathered rows in their natural (B, ., D) layout
    — no transpose, no pad (grid = cdiv handles the ragged tail)."""
    b, m_dim, d = v_rows.shape
    l_dim = u_rows.shape[1]
    tb_eff = _choose_batch_tile(b, tb)
    grid = (pl.cdiv(b, tb_eff),)
    if vmem_limit_bytes is None:
        vmem_limit_bytes = _vmem_budget_bytes()

    return pl.pallas_call(
        _pregathered_kernel,
        out_shape=jax.ShapeDtypeStruct((b, m_dim * l_dim), jnp.float32),
        grid_spec=pltpu.PrefetchScalarGridSpec(
            num_scalar_prefetch=0,
            grid=grid,
            in_specs=[
                pl.BlockSpec((tb_eff, m_dim, d), lambda i: (i, 0, 0)),
                pl.BlockSpec((tb_eff, l_dim, d), lambda i: (i, 0, 0)),
            ],
            out_specs=pl.BlockSpec((tb_eff, m_dim * l_dim), lambda i: (i, 0)),
        ),
        compiler_params=pltpu.CompilerParams(
            dimension_semantics=("parallel",),
            vmem_limit_bytes=vmem_limit_bytes,
        ),
    )(v_rows, u_rows)


# ---------------------------------------------------------------------------
# Forward pass
# ---------------------------------------------------------------------------
def skipgram_forward(v_weight, u_weight, centers, contexts_negatives, *,
                     tb=None, fuse_gather=None, act_dtype=jnp.bfloat16):
    """pred[b, m, l] = <v_embeddings[centers[b,m]], u_embeddings[ctx_neg[b,l]]>."""
    b, m_dim = centers.shape
    l_dim = contexts_negatives.shape[1]
    v_dim, d = v_weight.shape

    if fuse_gather is None:
        # Fused path keeps both (V, D) f32 tables VMEM-resident; gate it on the
        # per-generation VMEM budget (64 MiB/TC on v7x) with headroom for the
        # double-buffered id/score blocks, and on Mosaic gather support.
        table_bytes = 2 * v_dim * d * 4
        fuse_gather = (2 * table_bytes + 16 * _MIB <= _vmem_budget_bytes()
                       and _fused_gather_supported())

    if fuse_gather:
        scores = _fused_scores(v_weight, u_weight, centers, contexts_negatives,
                               tb=tb)
    else:
        # bf16 gathered activations halve the HBM read traffic into the kernel;
        # the kernel accumulates in f32.
        v_rows = jnp.take(v_weight, centers, axis=0).astype(act_dtype)
        u_rows = jnp.take(u_weight, contexts_negatives, axis=0).astype(act_dtype)
        scores = _pregathered_scores(v_rows, u_rows, tb=tb)
    return scores.reshape(b, m_dim, l_dim)


class SkipGramModelPallas:
    """JAX/Pallas re-implementation of the PyTorch SkipGramModel forward."""

    def __init__(self, emb_size, emb_dimension, key, table_dtype=jnp.float32):
        self.emb_size = emb_size
        self.emb_dimension = emb_dimension
        k1, k2 = jax.random.split(key)
        # xavier_uniform_ on an (V, D) nn.Embedding weight:
        # bound = sqrt(6 / (fan_in + fan_out)) = sqrt(6 / (V + D))
        bound = (6.0 / (emb_size + emb_dimension)) ** 0.5
        self.v_weight = jax.random.uniform(
            k1, (emb_size, emb_dimension), jnp.float32, -bound, bound
        ).astype(table_dtype)
        self.u_weight = jax.random.uniform(
            k2, (emb_size, emb_dimension), jnp.float32, -bound, bound
        ).astype(table_dtype)

    def __call__(self, centers, contexts_negatives, **kwargs):
        return skipgram_forward(self.v_weight, self.u_weight,
                                centers, contexts_negatives, **kwargs)


if __name__ == "__main__":
    key = jax.random.PRNGKey(0)
    k_model, k_c, k_ctx = jax.random.split(key, 3)

    emb_size = 64        # vocabulary size V
    emb_dimension = 32   # embedding dim D
    B, M, L = 2, 1, 8    # batch, centers-per-example, contexts + negatives

    model = SkipGramModelPallas(emb_size, emb_dimension, k_model)
    centers = jax.random.randint(k_c, (B, M), 0, emb_size, dtype=jnp.int32)
    contexts_negatives = jax.random.randint(
        k_ctx, (B, L), 0, emb_size, dtype=jnp.int32)

    # Reference: torch.bmm(v, u.permute(0, 2, 1)) semantics in plain JAX (f32).
    v_ref = jnp.take(model.v_weight, centers, axis=0)
    u_ref = jnp.take(model.u_weight, contexts_negatives, axis=0)
    ref = jnp.einsum("bmd,bld->bml", v_ref, u_ref)

    # Default path: fused gather with VMEM-resident tables when supported,
    # otherwise the pre-gathered fallback kicks in automatically.
    pred = jax.block_until_ready(model(centers, contexts_negatives))
    assert pred.shape == (B, M, L)
    assert jnp.allclose(pred, ref, rtol=1e-3, atol=1e-3)

    # Explicit fallback path (XLA gather + bf16 activations) — compile-checked
    # too; loosened tolerance accounts for the bf16 activation rounding.
    pred_fb = jax.block_until_ready(
        model(centers, contexts_negatives, fuse_gather=False))
    assert pred_fb.shape == (B, M, L)
    assert jnp.allclose(pred_fb, ref, rtol=2e-2, atol=2e-2)

    print("KERNEL_OK")
</pallas_src>

<mosaic_0001>
module attributes {stable_mosaic.version = 11 : i64} {
  func.func @_pregathered_kernel(%arg0: i32, %arg1: memref<2x1x32xbf16, #tpu.memory_space<vmem>>, %arg2: memref<2x8x32xbf16, #tpu.memory_space<vmem>>, %arg3: memref<2x8xf32, #tpu.memory_space<vmem>>) attributes {dimension_semantics = [#tpu.dimension_semantics<parallel>], iteration_bounds = array<i64: 1>, scalar_prefetch = 0 : i64, scratch_operands = 0 : i64, tpu.core_type = #tpu.core_type<tc>, window_params = [{transform_indices = @transform_0, window_bounds = array<i64: 2, 1, 32>}, {transform_indices = @transform_1, window_bounds = array<i64: 2, 8, 32>}, {transform_indices = @transform_2, window_bounds = array<i64: 2, 8>}]} {
    %c0 = arith.constant 0 : index
    %c0_0 = arith.constant 0 : index
    %c0_1 = arith.constant 0 : index
    %0 = vector.load %arg1[%c0, %c0_0, %c0_1] : memref<2x1x32xbf16, #tpu.memory_space<vmem>>, vector<2x1x32xbf16>
    %1 = vector.shape_cast %0 : vector<2x1x32xbf16> to vector<2x32xbf16>
    %2 = arith.extf %1 : vector<2x32xbf16> to vector<2x32xf32>
    %c0_2 = arith.constant 0 : index
    %c0_3 = arith.constant 0 : index
    %c0_4 = arith.constant 0 : index
    %3 = vector.load %arg2[%c0_2, %c0_3, %c0_4] : memref<2x8x32xbf16, #tpu.memory_space<vmem>>, vector<2x1x32xbf16>
    %4 = vector.shape_cast %3 : vector<2x1x32xbf16> to vector<2x32xbf16>
    %5 = arith.extf %4 : vector<2x32xbf16> to vector<2x32xf32>
    %6 = arith.mulf %2, %5 : vector<2x32xf32>
    %cst = arith.constant dense<0.000000e+00> : vector<2xf32>
    %7 = vector.multi_reduction <add>, %6, %cst [1] : vector<2x32xf32> to vector<2xf32>
    %8 = vector.shape_cast %7 : vector<2xf32> to vector<2x1xf32>
    %c0_5 = arith.constant 0 : index
    %c1 = arith.constant 1 : index
    %c0_6 = arith.constant 0 : index
    %9 = vector.load %arg2[%c0_5, %c1, %c0_6] : memref<2x8x32xbf16, #tpu.memory_space<vmem>>, vector<2x1x32xbf16>
    %10 = vector.shape_cast %9 : vector<2x1x32xbf16> to vector<2x32xbf16>
    %11 = arith.extf %10 : vector<2x32xbf16> to vector<2x32xf32>
    %12 = arith.mulf %2, %11 : vector<2x32xf32>
    %cst_7 = arith.constant dense<0.000000e+00> : vector<2xf32>
    %13 = vector.multi_reduction <add>, %12, %cst_7 [1] : vector<2x32xf32> to vector<2xf32>
    %14 = vector.shape_cast %13 : vector<2xf32> to vector<2x1xf32>
    %c0_8 = arith.constant 0 : index
    %c2 = arith.constant 2 : index
    %c0_9 = arith.constant 0 : index
    %15 = vector.load %arg2[%c0_8, %c2, %c0_9] : memref<2x8x32xbf16, #tpu.memory_space<vmem>>, vector<2x1x32xbf16>
    %16 = vector.shape_cast %15 : vector<2x1x32xbf16> to vector<2x32xbf16>
    %17 = arith.extf %16 : vector<2x32xbf16> to vector<2x32xf32>
    %18 = arith.mulf %2, %17 : vector<2x32xf32>
    %cst_10 = arith.constant dense<0.000000e+00> : vector<2xf32>
    %19 = vector.multi_reduction <add>, %18, %cst_10 [1] : vector<2x32xf32> to vector<2xf32>
    %20 = vector.shape_cast %19 : vector<2xf32> to vector<2x1xf32>
    %c0_11 = arith.constant 0 : index
    %c3 = arith.constant 3 : index
    %c0_12 = arith.constant 0 : index
    %21 = vector.load %arg2[%c0_11, %c3, %c0_12] : memref<2x8x32xbf16, #tpu.memory_space<vmem>>, vector<2x1x32xbf16>
    %22 = vector.shape_cast %21 : vector<2x1x32xbf16> to vector<2x32xbf16>
    %23 = arith.extf %22 : vector<2x32xbf16> to vector<2x32xf32>
    %24 = arith.mulf %2, %23 : vector<2x32xf32>
    %cst_13 = arith.constant dense<0.000000e+00> : vector<2xf32>
    %25 = vector.multi_reduction <add>, %24, %cst_13 [1] : vector<2x32xf32> to vector<2xf32>
    %26 = vector.shape_cast %25 : vector<2xf32> to vector<2x1xf32>
    %c0_14 = arith.constant 0 : index
    %c4 = arith.constant 4 : index
    %c0_15 = arith.constant 0 : index
    %27 = vector.load %arg2[%c0_14, %c4, %c0_15] : memref<2x8x32xbf16, #tpu.memory_space<vmem>>, vector<2x1x32xbf16>
    %28 = vector.shape_cast %27 : vector<2x1x32xbf16> to vector<2x32xbf16>
    %29 = arith.extf %28 : vector<2x32xbf16> to vector<2x32xf32>
    %30 = arith.mulf %2, %29 : vector<2x32xf32>
    %cst_16 = arith.constant dense<0.000000e+00> : vector<2xf32>
    %31 = vector.multi_reduction <add>, %30, %cst_16 [1] : vector<2x32xf32> to vector<2xf32>
    %32 = vector.shape_cast %31 : vector<2xf32> to vector<2x1xf32>
    %c0_17 = arith.constant 0 : index
    %c5 = arith.constant 5 : index
    %c0_18 = arith.constant 0 : index
    %33 = vector.load %arg2[%c0_17, %c5, %c0_18] : memref<2x8x32xbf16, #tpu.memory_space<vmem>>, vector<2x1x32xbf16>
    %34 = vector.shape_cast %33 : vector<2x1x32xbf16> to vector<2x32xbf16>
    %35 = arith.extf %34 : vector<2x32xbf16> to vector<2x32xf32>
    %36 = arith.mulf %2, %35 : vector<2x32xf32>
    %cst_19 = arith.constant dense<0.000000e+00> : vector<2xf32>
    %37 = vector.multi_reduction <add>, %36, %cst_19 [1] : vector<2x32xf32> to vector<2xf32>
    %38 = vector.shape_cast %37 : vector<2xf32> to vector<2x1xf32>
    %c0_20 = arith.constant 0 : index
    %c6 = arith.constant 6 : index
    %c0_21 = arith.constant 0 : index
    %39 = vector.load %arg2[%c0_20, %c6, %c0_21] : memref<2x8x32xbf16, #tpu.memory_space<vmem>>, vector<2x1x32xbf16>
    %40 = vector.shape_cast %39 : vector<2x1x32xbf16> to vector<2x32xbf16>
    %41 = arith.extf %40 : vector<2x32xbf16> to vector<2x32xf32>
    %42 = arith.mulf %2, %41 : vector<2x32xf32>
    %cst_22 = arith.constant dense<0.000000e+00> : vector<2xf32>
    %43 = vector.multi_reduction <add>, %42, %cst_22 [1] : vector<2x32xf32> to vector<2xf32>
    %44 = vector.shape_cast %43 : vector<2xf32> to vector<2x1xf32>
    %c0_23 = arith.constant 0 : index
    %c7 = arith.constant 7 : index
    %c0_24 = arith.constant 0 : index
    %45 = vector.load %arg2[%c0_23, %c7, %c0_24] : memref<2x8x32xbf16, #tpu.memory_space<vmem>>, vector<2x1x32xbf16>
    %46 = vector.shape_cast %45 : vector<2x1x32xbf16> to vector<2x32xbf16>
    %47 = arith.extf %46 : vector<2x32xbf16> to vector<2x32xf32>
    %48 = arith.mulf %2, %47 : vector<2x32xf32>
    %cst_25 = arith.constant dense<0.000000e+00> : vector<2xf32>
    %49 = vector.multi_reduction <add>, %48, %cst_25 [1] : vector<2x32xf32> to vector<2xf32>
    %50 = vector.shape_cast %49 : vector<2xf32> to vector<2x1xf32>
    %51 = tpu.concatenate %8, %14, %20, %26, %32, %38, %44, %50 in 1 : vector<2x1xf32>, vector<2x1xf32>, vector<2x1xf32>, vector<2x1xf32>, vector<2x1xf32>, vector<2x1xf32>, vector<2x1xf32>, vector<2x1xf32> -> vector<2x8xf32>
    %c0_26 = arith.constant 0 : index
    %c0_27 = arith.constant 0 : index
    %52 = vector.load %arg3[%c0_26, %c0_27] : memref<2x8xf32, #tpu.memory_space<vmem>>, vector<2x8xf32>
    tpu.vector_store %arg3[%c0_26, %c0_27], %51 {strides = array<i32>} : memref<2x8xf32, #tpu.memory_space<vmem>>, vector<2x8xf32>,
    return
  }
  func.func @transform_0(%arg0: i32) -> (i32, i32, i32) {
    %c0_i32 = arith.constant 0 : i32
    %c0_i32_0 = arith.constant 0 : i32
    %c0_i32_1 = arith.constant 0 : i32
    return %arg0, %c0_i32, %c0_i32_0 : i32, i32, i32
  }
  func.func @transform_1(%arg0: i32) -> (i32, i32, i32) {
    %c0_i32 = arith.constant 0 : i32
    %c0_i32_0 = arith.constant 0 : i32
    %c0_i32_1 = arith.constant 0 : i32
    return %arg0, %c0_i32, %c0_i32_0 : i32, i32, i32
  }
  func.func @transform_2(%arg0: i32) -> (i32, i32) {
    %c0_i32 = arith.constant 0 : i32
    %c0_i32_0 = arith.constant 0 : i32
    return %arg0, %c0_i32 : i32, i32
  }
}

</mosaic_0001>

<llo_original>
// kernel: tpu_custom_call.1
$region0: #{tpu_custom_call.1}
  #allocation0 [shape = 'u32[]', space=smem, size = 0x4, offset = 0x4, fixed_abs, tag = 'smem constant byte address 0x4 - core index']
  #allocation1 [shape = 'u32[144,128]{1,0:T(1,128)}', space=vmem, size = 0x12000, scoped, tag = 'internal scratch']
  %s0 = inlined_call_operand.vmem [shape: bf16[2,1,32], index: 0, kind: input, shape index: {}]
  %s1 = inlined_call_operand.hbm [shape: bf16[2,8,32], index: 1, kind: input, shape index: {}]
  %s2 = inlined_call_operand.hbm [shape: f32[2,8], index: 2, kind: output, shape index: {}]
  %s3 = sld [smem:[#allocation0]]
  $region22: #{tpu_custom_call.1} parent=0
    _
  %s5 = ssub.s32 1, %s3
  %s6 = scalar_select 0, %s5, %s3
  $region1: #{tpu_custom_call.1} parent=0
    #allocation2 [shape = 'u8[4096]{0}', space=vmem, size = 0x1000, scoped, tag = 'input window, operand 1, single buffered']
    #allocation3 [shape = 's32[1]{0}', space=sflag, size = 0x4, scoped, tag = 'scoped memory for tpu_custom_call.1']
    #allocation4 [shape = 's32[1]{0}', space=sflag, size = 0x4, scoped, tag = 'scoped memory for tpu_custom_call.1']
    #allocation5 [shape = 'u8[1024]{0}', space=vmem, size = 0x400, scoped, tag = 'output window, operand 0, single buffered']
    %7 = vsyncpa [#allocation3], 0
    %8 = vsyncpa [#allocation4], 0
    // Predicated region
    $region2: #{tpu_custom_call.1} parent=1 // pred_check
      _
    $region3: #{tpu_custom_call.1} parent=1 // pred_check_branch
      %10 = sbr.rel (0) target = $region5
    $region4: #{tpu_custom_call.1} parent=1 // pred_region
      _
    $region5: #{tpu_custom_call.1} parent=1 // pred_fallthru
      _
    // Predicated region
    $region6: #{tpu_custom_call.1} parent=1 // pred_check
      _
    $region7: #{tpu_custom_call.1} parent=1 // pred_check_branch
      %12 = sbr.rel (0) target = $region9
    $region8: #{tpu_custom_call.1} parent=1 // pred_region
      %s14 = ssub.s32 128, 128
      %15 = vsyncadd [#allocation3], %s14
      %s16 = sshll.u32 [#allocation2], 4
      %s17 = int_to_ptr.vmem [resolvable:$true] %s16
      %22 = dma.hbm_to_vmem [thread:$0]  %s1, 128, %s17, [#allocation3], 64, 64, 4
    $region9: #{tpu_custom_call.1} parent=1 // pred_fallthru
      _
    // Predicated region
    $region10: #{tpu_custom_call.1} parent=1 // pred_check
      _
    $region11: #{tpu_custom_call.1} parent=1 // pred_check_branch
      %24 = sbr.rel (0) target = $region13
    $region12: #{tpu_custom_call.1} parent=1 // pred_region
      %25 = dma.done [#allocation3], 128
    $region13: #{tpu_custom_call.1} parent=1 // pred_fallthru
      _
    %v26 = vld [vmem:[%s0] sm:$0x1]
    %v27 = vld [vmem:[%s0 + $0x1] sm:$0x1]
    %v28 = vunpack.c.l.bf16 %v26
    %v29 = vunpack.c.l.bf16 %v27
    %v30 = vld [vmem:[#allocation2] sm:$0x1]
    %v31 = vld [vmem:[#allocation2 + $0x4] sm:$0x1]
    %v32 = vunpack.c.l.bf16 %v30
    %v33 = vunpack.c.l.bf16 %v31
    %v34 = vmul.f32 %v28, %v32
    %v35 = vmul.f32 %v29, %v33
    %v38 = vlaneseq
    %v39 = vshrl.u32 %v38, 7
    %v40 = vsub.s32 0, %v39
    %v41 = vrot.slane %v34, %v40
    %v42 = vlaneseq
    %v43 = vshrl.u32 %v42, 7
    %v44 = vsub.s32 0, %v43
    %v45 = vrot.slane %v35, %v44
    %vm46 = vcmask 1041409
    %v47 = vsel %vm46, %v45, %v41
    %vm49 = vcmask 254976
    %v50 = vsel %vm49, %v47, 0.0
    %51 = vadd.xlane.f32.xlu0 %v50
    %v52 = vpop.xlane.xlu0 %51
    %v56 = vunpack.c.l.s4 1983009808
    %v57 = vunpack.c.0.s8 %v56
    %v58 = vlaneseq
    %v59 = vshrl.u32 %v58, 7
    %v60 = vsub.s32 %v57, %v59
    %v61 = vrot.slane %v32, %v60
    %v63 = vunpack.c.l.s4 1983009808
    %v64 = vunpack.c.0.s8 %v63
    %v65 = vlaneseq
    %v66 = vshrl.u32 %v65, 7
    %v67 = vsub.s32 %v64, %v66
    %v68 = vrot.slane %v33, %v67
    %v69 = vrot.slane %v61, 7
    %v70 = vrot.slane %v69, 2
    %v71 = vrot.slane %v68, 7
    %v72 = vrot.slane %v71, 2
    %v75 = vmul.f32 %v28, %v70
    %v76 = vmul.f32 %v29, %v72
    %v79 = vlaneseq
    %v80 = vshrl.u32 %v79, 7
    %v81 = vsub.s32 0, %v80
    %v82 = vrot.slane %v75, %v81
    %v83 = vlaneseq
    %v84 = vshrl.u32 %v83, 7
    %v85 = vsub.s32 0, %v84
    %v86 = vrot.slane %v76, %v85
    %v87 = vsel %vm46, %v86, %v82
    %v89 = vsel %vm49, %v87, 0.0
    %90 = vadd.xlane.f32.xlu0 %v89
    %v91 = vpop.xlane.xlu0 %90
    %v92 = vld [vmem:[#allocation2] sm:$0x2]
    %v93 = vld [vmem:[#allocation2 + $0x4] sm:$0x2]
    %v94 = vunpack.c.l.bf16 %v92
    %v95 = vunpack.c.l.bf16 %v93
    %v99 = vunpack.c.l.s4 1983009808
    %v100 = vunpack.c.0.s8 %v99
    %v101 = vlaneseq
    %v102 = vshrl.u32 %v101, 7
    %v103 = vsub.s32 %v100, %v102
    %v104 = vrot.slane %v94, %v103
    %v105 = vcombine.high %v104, %v104
    %v107 = vunpack.c.l.s4 1983009808
    %v108 = vunpack.c.0.s8 %v107
    %v109 = vlaneseq
    %v110 = vshrl.u32 %v109, 7
    %v111 = vsub.s32 %v108, %v110
    %v112 = vrot.slane %v95, %v111
    %v113 = vcombine.high %v112, %v112
    %v116 = vmul.f32 %v28, %v105
    %v117 = vmul.f32 %v29, %v113
    %v120 = vlaneseq
    %v121 = vshrl.u32 %v120, 7
    %v122 = vsub.s32 0, %v121
    %v123 = vrot.slane %v116, %v122
    %v124 = vlaneseq
    %v125 = vshrl.u32 %v124, 7
    %v126 = vsub.s32 0, %v125
    %v127 = vrot.slane %v117, %v126
    %v128 = vsel %vm46, %v127, %v123
    %v130 = vsel %vm49, %v128, 0.0
    %131 = vadd.xlane.f32.xlu0 %v130
    %v132 = vpop.xlane.xlu0 %131
    %v133 = vrot.slane %v105, 7
    %v134 = vrot.slane %v133, 2
    %v135 = vrot.slane %v113, 7
    %v136 = vrot.slane %v135, 2
    %v139 = vmul.f32 %v28, %v134
    %v140 = vmul.f32 %v29, %v136
    %v143 = vlaneseq
    %v144 = vshrl.u32 %v143, 7
    %v145 = vsub.s32 0, %v144
    %v146 = vrot.slane %v139, %v145
    %v147 = vlaneseq
    %v148 = vshrl.u32 %v147, 7
    %v149 = vsub.s32 0, %v148
    %v150 = vrot.slane %v140, %v149
    %v151 = vsel %vm46, %v150, %v146
    %v153 = vsel %vm49, %v151, 0.0
    %154 = vadd.xlane.f32.xlu0 %v153
    %v155 = vpop.xlane.xlu0 %154
    %v156 = vld [vmem:[#allocation2] sm:$0x4]
    %v157 = vld [vmem:[#allocation2 + $0x4] sm:$0x4]
    %v158 = vunpack.c.l.bf16 %v156
    %v159 = vunpack.c.l.bf16 %v157
    %v162 = vcombine.high %v158, %v158
    %v164 = vunpack.c.l.s4 1983009808
    %v165 = vunpack.c.0.s8 %v164
    %v166 = vlaneseq
    %v167 = vshrl.u32 %v166, 7
    %v168 = vsub.s32 %v165, %v167
    %v169 = vrot.slane %v162, %v168
    %v170 = vcombine.high %v159, %v159
    %v172 = vunpack.c.l.s4 1983009808
    %v173 = vunpack.c.0.s8 %v172
    %v174 = vlaneseq
    %v175 = vshrl.u32 %v174, 7
    %v176 = vsub.s32 %v173, %v175
    %v177 = vrot.slane %v170, %v176
    %v180 = vmul.f32 %v28, %v169
    %v181 = vmul.f32 %v29, %v177
    %v184 = vlaneseq
    %v185 = vshrl.u32 %v184, 7
    %v186 = vsub.s32 0, %v185
    %v187 = vrot.slane %v180, %v186
    %v188 = vlaneseq
    %v189 = vshrl.u32 %v188, 7
    %v190 = vsub.s32 0, %v189
    %v191 = vrot.slane %v181, %v190
    %v192 = vsel %vm46, %v191, %v187
    %v194 = vsel %vm49, %v192, 0.0
    %195 = vadd.xlane.f32.xlu0 %v194
    %v196 = vpop.xlane.xlu0 %195
    %v197 = vrot.slane %v169, 7
    %v198 = vrot.slane %v197, 2
    %v199 = vrot.slane %v177, 7
    %v200 = vrot.slane %v199, 2
    %v203 = vmul.f32 %v28, %v198
    %v204 = vmul.f32 %v29, %v200
    %v207 = vlaneseq
    %v208 = vshrl.u32 %v207, 7
    %v209 = vsub.s32 0, %v208
    %v210 = vrot.slane %v203, %v209
    %v211 = vlaneseq
    %v212 = vshrl.u32 %v211, 7
    %v213 = vsub.s32 0, %v212
    %v214 = vrot.slane %v204, %v213
    %v215 = vsel %vm46, %v214, %v210
    %v217 = vsel %vm49, %v215, 0.0
    %218 = vadd.xlane.f32.xlu0 %v217
    %v219 = vpop.xlane.xlu0 %218
    %v220 = vld [vmem:[#allocation2] sm:$0x8]
    %v221 = vld [vmem:[#allocation2 + $0x4] sm:$0x8]
    %v222 = vunpack.c.l.bf16 %v220
    %v223 = vunpack.c.l.bf16 %v221
    %v226 = vcombine.high %v222, %v222
    %v228 = vunpack.c.l.s4 1983009808
    %v229 = vunpack.c.0.s8 %v228
    %v230 = vlaneseq
    %v231 = vshrl.u32 %v230, 7
    %v232 = vsub.s32 %v229, %v231
    %v233 = vrot.slane %v226, %v232
    %v234 = vcombine.high %v233, %v233
    %v235 = vcombine.high %v223, %v223
    %v237 = vunpack.c.l.s4 1983009808
    %v238 = vunpack.c.0.s8 %v237
    %v239 = vlaneseq
    %v240 = vshrl.u32 %v239, 7
    %v241 = vsub.s32 %v238, %v240
    %v242 = vrot.slane %v235, %v241
    %v243 = vcombine.high %v242, %v242
    %v246 = vmul.f32 %v28, %v234
    %v247 = vmul.f32 %v29, %v243
    %v250 = vlaneseq
    %v251 = vshrl.u32 %v250, 7
    %v252 = vsub.s32 0, %v251
    %v253 = vrot.slane %v246, %v252
    %v254 = vlaneseq
    %v255 = vshrl.u32 %v254, 7
    %v256 = vsub.s32 0, %v255
    %v257 = vrot.slane %v247, %v256
    %v258 = vsel %vm46, %v257, %v253
    %v260 = vsel %vm49, %v258, 0.0
    %261 = vadd.xlane.f32.xlu0 %v260
    %v262 = vpop.xlane.xlu0 %261
    %v263 = vrot.slane %v234, 7
    %v264 = vrot.slane %v263, 2
    %v265 = vrot.slane %v243, 7
    %v266 = vrot.slane %v265, 2
    %v269 = vmul.f32 %v28, %v264
    %v270 = vmul.f32 %v29, %v266
    %v273 = vlaneseq
    %v274 = vshrl.u32 %v273, 7
    %v275 = vsub.s32 0, %v274
    %v276 = vrot.slane %v269, %v275
    %v277 = vlaneseq
    %v278 = vshrl.u32 %v277, 7
    %v279 = vsub.s32 0, %v278
    %v280 = vrot.slane %v270, %v279
    %v281 = vsel %vm46, %v280, %v276
    %v283 = vsel %vm49, %v281, 0.0
    %284 = vadd.xlane.f32.xlu0 %v283
    %v285 = vpop.xlane.xlu0 %284
    %vm286 = vcmask 7168
    %v287 = vsel %vm286, %v52, %v91
    %vm288 = vcmask 15360
    %v289 = vsel %vm288, %v287, %v132
    %vm290 = vcmask 23552
    %v291 = vsel %vm290, %v289, %v155
    %vm292 = vcmask 31744
    %v293 = vsel %vm292, %v291, %v196
    %vm294 = vcmask 39936
    %v295 = vsel %vm294, %v293, %v219
    %vm296 = vcmask 48128
    %v297 = vsel %vm296, %v295, %v262
    %vm298 = vcmask 56320
    %v299 = vsel %vm298, %v297, %v285
    %vm300 = vcmask 58368
    %301 = vst.msk [vmem:[#allocation5] sm:$0x3] %vm300, %v299
    // Predicated region
    $region14: #{tpu_custom_call.1} parent=1 // pred_check
      _
    $region15: #{tpu_custom_call.1} parent=1 // pred_check_branch
      %303 = sbr.rel (0) target = $region17
    $region16: #{tpu_custom_call.1} parent=1 // pred_region
      %s305 = ssub.s32 32, 32
      %306 = vsyncadd [#allocation4], %s305
      %s308 = sshll.u32 [#allocation5], 4
      %s309 = int_to_ptr.vmem [resolvable:$true] %s308
      %311 = dma.vmem_to_hbm [thread:$0]  %s309, 32, %s2, [#allocation4]
    $region17: #{tpu_custom_call.1} parent=1 // pred_fallthru
      _
    // Predicated region
    $region18: #{tpu_custom_call.1} parent=1 // pred_check
      _
    $region19: #{tpu_custom_call.1} parent=1 // pred_check_branch
      %313 = sbr.rel (0) target = $region21
    $region20: #{tpu_custom_call.1} parent=1 // pred_region
      %314 = dma.done [#allocation4], 32
    $region21: #{tpu_custom_call.1} parent=1 // pred_fallthru
      _
    %315 = vsyncpa [#allocation3], 1
    %316 = vsyncpa [#allocation4], 1

</llo_original>
